<compile_context>
chip_gen: v7x
topology: tpu7x:2x2x1
jax: 0.10.0
libtpu: 0.0.40
codegen_flags: <defaults>
</compile_context>

<pallas_src>
import functools
import math

import jax
import jax.numpy as jnp
from jax.experimental import pallas as pl
from jax.experimental.pallas import tpu as pltpu


# ---------------------------------------------------------------------------
# Kernel 1: streamed mean-pool over T + linear backbone projection
# ---------------------------------------------------------------------------
def _pool_project_kernel(x_ref, wb_ref, bb_ref, emb_ref, embn_ref, acc_ref, *,
                         inv_t, seq_len, t_tile):
    """x [Bt,Tt,F] streamed over T; W_b [F,D] / bias [1,D] resident.

    Emits emb = mean_T(x) @ W_b + b and its L2-normalized copy (so the ArcFace
    head never renormalizes the embeddings per S tile).
    """
    t = pl.program_id(1)

    @pl.when(t == 0)
    def _():
        acc_ref[...] = jnp.zeros_like(acc_ref)

    xv = x_ref[...].astype(jnp.float32)                         # [Bt, Tt, F]
    if seq_len % t_tile != 0:
        # Partial last T tile: frames beyond seq_len hold stale VMEM data; mask
        # them (jnp.where is a select, so even NaN garbage is harmless).
        t_idx = jax.lax.broadcasted_iota(jnp.int32, xv.shape, 1)
        xv = jnp.where(t_idx < (seq_len - t * t_tile), xv, 0.0)
    acc_ref[...] += jnp.sum(xv, axis=1)                         # time-sum [Bt, F]

    @pl.when(t == pl.num_programs(1) - 1)
    def _():
        x_mean = acc_ref[...] * inv_t                           # [Bt, F] f32
        emb = jnp.dot(x_mean.astype(wb_ref.dtype), wb_ref[...],
                      preferred_element_type=jnp.float32) + bb_ref[...]
        emb_ref[...] = emb.astype(emb_ref.dtype)                # [Bt, D] f32
        # F.normalize(eps=1e-12): 1/max(||e||, eps) == rsqrt(max(sumsq, eps^2))
        inv_norm = jax.lax.rsqrt(
            jnp.maximum(jnp.sum(emb * emb, axis=1, keepdims=True), 1e-24))
        embn_ref[...] = (emb * inv_norm).astype(embn_ref.dtype)


# ---------------------------------------------------------------------------
# Kernel 2: ArcFace head, tiled over the speaker (S) axis
# ---------------------------------------------------------------------------
def _arcface_kernel(embn_ref, wa_ref, labels_ref, logits_ref, *,
                    scale_factor, cos_m, sin_m, s_tile):
    """embn [B,D] resident (matmul dtype), w_arcface tile [St,D] streamed.

    The raw (bf16) weight tile is matmul'd directly; the per-row 1/||w|| is
    folded into the [B,St] output (B*St multiplies instead of St*D, no scaled
    [St,D] temporaries).  cos(theta+m) uses the cosine-addition identity.
    """
    s = pl.program_id(0)

    w = wa_ref[...]                                             # [St, D]
    cos_theta = jax.lax.dot_general(
        embn_ref[...], w,
        dimension_numbers=(((1,), (1,)), ((), ())),             # contract D of both
        preferred_element_type=jnp.float32)                     # [B, St]

    # Row sum-of-squares as a [1, St] (lane-major) via a ones-row matmul; keeps
    # everything 2-D and lets the (idle) MXU do the reduction.
    wsq = jnp.square(w.astype(jnp.float32))                     # [St, D] f32
    ones_row = jnp.ones((1, wsq.shape[1]), dtype=jnp.float32)
    sumsq = jax.lax.dot_general(
        ones_row, wsq, dimension_numbers=(((1,), (1,)), ((), ())),
        preferred_element_type=jnp.float32)                     # [1, St]
    inv_wnorm = jax.lax.rsqrt(jnp.maximum(sumsq, 1e-24))        # [1, St]

    cos_theta = jnp.clip(cos_theta * inv_wnorm, -1.0 + 1e-07, 1.0 - 1e-07)
    # theta in (0, pi) after the clip, so sin(theta) = sqrt(1 - cos^2) >= 0 and
    # cos(theta + m) = cos*cos_m - sin*sin_m exactly matches acos-then-cos.
    sin_theta = jnp.sqrt(1.0 - cos_theta * cos_theta)
    col = (jax.lax.broadcasted_iota(jnp.int32, cos_theta.shape, dimension=1)
           + s * s_tile)
    one_hot = col == labels_ref[...]                            # [B,1] -> [B,St]
    logits = jnp.where(one_hot,
                       cos_theta * cos_m - sin_theta * sin_m,
                       cos_theta)
    logits_ref[...] = (logits * scale_factor).astype(logits_ref.dtype)


# ---------------------------------------------------------------------------
# Wrapper: tile selection (VMEM-budget aware), grids, BlockSpecs
# ---------------------------------------------------------------------------
def _vmem_limit_bytes():
    """~48 MiB on v7x (64 MiB physical VMEM), ~96 MiB on v5e/v6e (128 MiB)."""
    cap = 64 * 1024 * 1024
    try:
        cap = pltpu.get_tpu_info().vmem_capacity_bytes
    except Exception:
        pass
    return int(min(cap * 3 // 4, 96 * 1024 * 1024))


def speaker_verification_forward(x, w_backbone, b_backbone, w_arcface, labels, *,
                                 scale_factor=30.0, margin=0.2,
                                 matmul_dtype=jnp.bfloat16,
                                 t_tile=None, s_tile=1024):
    """Returns (logits [B, S], embeddings [B, D]) == SpeakerVerificationModel(x, labels)."""
    B, T, F = x.shape
    D = w_backbone.shape[1]
    S = w_arcface.shape[0]

    vmem_limit = _vmem_limit_bytes()

    # --- tile selection ------------------------------------------------------
    # Parallel B axis (lets v7x's 2nd TensorCore share the x stream) only when
    # it tiles cleanly into 16-row blocks; otherwise a single full-B block.
    Bt = 16 if (B >= 32 and B % 16 == 0) else B
    nb = B // Bt

    # T tile from the VMEM budget: the streamed x double-buffer dominates.
    x_bytes = jnp.dtype(x.dtype).itemsize
    if t_tile is None:
        t_tile = max(8, ((vmem_limit // 2) // (2 * Bt * F * x_bytes)) // 8 * 8)
    Tt = T if t_tile >= T else max(8, (t_tile // 8) * 8)
    nt = -(-T // Tt)

    # S tile: wide multiple of 128 (no 128 fallback); the S remainder is a
    # masked partial last block, so w_arcface is never padded.
    wa_bytes = jnp.dtype(matmul_dtype).itemsize
    s_budget = (vmem_limit // 2) // (2 * max(D, 1) * wa_bytes)
    st = max(128, min(s_tile, (s_budget // 128) * 128))
    St = S if S <= st else st
    ns = -(-S // St)

    # --- operands (dtype-only copies; no padding) ----------------------------
    wb_in = w_backbone.astype(matmul_dtype)                       # [F, D]
    bb_in = jnp.asarray(b_backbone, jnp.float32).reshape(1, D)    # [1, D]
    wa_in = w_arcface.astype(matmul_dtype)                        # [S, D] streamed
    lab_in = jnp.asarray(labels, jnp.int32).reshape(B, 1)         # [B, 1]

    # --- pool + project: grid (B parallel, T reduction/"arbitrary") ----------
    emb, embn = pl.pallas_call(
        functools.partial(_pool_project_kernel, inv_t=1.0 / T,
                          seq_len=T, t_tile=Tt),
        grid_spec=pltpu.PrefetchScalarGridSpec(
            num_scalar_prefetch=0,
            grid=(nb, nt),
            in_specs=[
                pl.BlockSpec((Bt, Tt, F), lambda b, t: (b, t, 0)),  # stream x
                pl.BlockSpec((F, D), lambda b, t: (0, 0)),          # resident W_b
                pl.BlockSpec((1, D), lambda b, t: (0, 0)),          # resident bias
            ],
            out_specs=[
                pl.BlockSpec((Bt, D), lambda b, t: (b, 0)),         # emb (f32)
                pl.BlockSpec((Bt, D), lambda b, t: (b, 0)),         # emb L2-normed
            ],
            scratch_shapes=[pltpu.VMEM((Bt, F), jnp.float32)],      # time-sum acc
        ),
        out_shape=(
            jax.ShapeDtypeStruct((B, D), jnp.float32),
            jax.ShapeDtypeStruct((B, D), matmul_dtype),
        ),
        compiler_params=pltpu.CompilerParams(
            dimension_semantics=("parallel", "arbitrary"),
            vmem_limit_bytes=vmem_limit),
    )(x, wb_in, bb_in)

    # --- ArcFace head: grid over S ("parallel") ------------------------------
    logits = pl.pallas_call(
        functools.partial(_arcface_kernel, scale_factor=scale_factor,
                          cos_m=math.cos(margin), sin_m=math.sin(margin),
                          s_tile=St),
        grid_spec=pltpu.PrefetchScalarGridSpec(
            num_scalar_prefetch=0,
            grid=(ns,),
            in_specs=[
                pl.BlockSpec((B, D), lambda s: (0, 0)),    # resident emb_n
                pl.BlockSpec((St, D), lambda s: (s, 0)),   # stream ArcFace W (bf16)
                pl.BlockSpec((B, 1), lambda s: (0, 0)),    # labels (tiny)
            ],
            out_specs=pl.BlockSpec((B, St), lambda s: (0, s)),
        ),
        out_shape=jax.ShapeDtypeStruct((B, S), jnp.float32),
        compiler_params=pltpu.CompilerParams(
            dimension_semantics=("parallel",),
            vmem_limit_bytes=vmem_limit),
    )(embn, wa_in, lab_in)

    return logits, emb


# ---------------------------------------------------------------------------
# Pure-JAX reference (mirrors the PyTorch module exactly: acos path)
# ---------------------------------------------------------------------------
def _reference_forward(x, w_backbone, b_backbone, w_arcface, labels,
                       scale_factor=30.0, margin=0.2):
    hidden = jnp.einsum("btf,fd->btd", x, w_backbone) + b_backbone[0]
    emb = jnp.mean(hidden, axis=1)
    eps = 1e-12
    emb_n = emb / jnp.maximum(jnp.linalg.norm(emb, axis=1, keepdims=True), eps)
    w_n = w_arcface / jnp.maximum(
        jnp.linalg.norm(w_arcface, axis=1, keepdims=True), eps)
    cos = jnp.clip(emb_n @ w_n.T, -1.0 + 1e-07, 1.0 - 1e-07)
    theta = jnp.arccos(cos)
    one_hot = jax.nn.one_hot(labels[:, 0], w_arcface.shape[0], dtype=jnp.float32)
    logits = jnp.cos(theta + one_hot * margin) * scale_factor
    return logits, emb


def _make_inputs(key, B, T, F, D, S):
    k_x, k_wb, k_bb, k_wa, k_lab = jax.random.split(key, 5)
    x = jax.random.normal(k_x, (B, T, F), dtype=jnp.float32)
    w_backbone = jax.random.normal(k_wb, (F, D), dtype=jnp.float32) * 0.05
    b_backbone = jax.random.normal(k_bb, (1, D), dtype=jnp.float32) * 0.01
    bound = (6.0 / (S + D)) ** 0.5           # xavier_uniform_ for (S, D)
    w_arcface = jax.random.uniform(k_wa, (S, D), dtype=jnp.float32,
                                   minval=-bound, maxval=bound)
    labels = jax.random.randint(k_lab, (B, 1), 0, S, dtype=jnp.int32)
    return x, w_backbone, b_backbone, w_arcface, labels


if __name__ == "__main__":
    key = jax.random.PRNGKey(0)
    k1, k2 = jax.random.split(key)

    # --- small shapes consistent with the module's forward -------------------
    B, T, F, D, S = 2, 8, 32, 32, 16
    x, w_backbone, b_backbone, w_arcface, labels = _make_inputs(k1, B, T, F, D, S)
    ref_logits, ref_emb = _reference_forward(x, w_backbone, b_backbone,
                                             w_arcface, labels)

    # Strict numerical check: f32 matmul operands.
    logits, emb = speaker_verification_forward(
        x, w_backbone, b_backbone, w_arcface, labels, matmul_dtype=jnp.float32)
    jax.block_until_ready((logits, emb))
    assert logits.shape == (B, S) and emb.shape == (B, D)
    assert jnp.allclose(emb, ref_emb, rtol=1e-3, atol=1e-3)
    assert jnp.allclose(logits, ref_logits, rtol=1e-2, atol=1e-2)

    # Default bf16 MXU / bf16-weight-stream path: looser tolerance.
    logits_bf, emb_bf = speaker_verification_forward(
        x, w_backbone, b_backbone, w_arcface, labels)
    jax.block_until_ready((logits_bf, emb_bf))
    assert jnp.allclose(emb_bf, ref_emb, rtol=2e-2, atol=2e-2)
    assert jnp.allclose(logits_bf / 30.0, ref_logits / 30.0, rtol=2e-2, atol=2e-2)

    # --- uneven shapes: exercise the masked partial T and S tiles ------------
    B2, T2, F2, D2, S2 = 2, 20, 32, 32, 130
    x2, wb2, bb2, wa2, lab2 = _make_inputs(k2, B2, T2, F2, D2, S2)
    ref_logits2, ref_emb2 = _reference_forward(x2, wb2, bb2, wa2, lab2)
    logits2, emb2 = speaker_verification_forward(
        x2, wb2, bb2, wa2, lab2, matmul_dtype=jnp.float32, t_tile=8, s_tile=128)
    jax.block_until_ready((logits2, emb2))
    assert logits2.shape == (B2, S2) and emb2.shape == (B2, D2)
    assert jnp.allclose(emb2, ref_emb2, rtol=1e-3, atol=1e-3)
    assert jnp.allclose(logits2, ref_logits2, rtol=1e-2, atol=1e-2)

    print("KERNEL_OK")
</pallas_src>

<mosaic_0001>
module attributes {stable_mosaic.version = 11 : i64} {
  func.func @_pool_project_kernel(%arg0: i32, %arg1: i32, %arg2: memref<2x8x32xf32, #tpu.memory_space<vmem>>, %arg3: memref<32x32xf32, #tpu.memory_space<vmem>>, %arg4: memref<1x32xf32, #tpu.memory_space<vmem>>, %arg5: memref<2x32xf32, #tpu.memory_space<vmem>>, %arg6: memref<2x32xf32, #tpu.memory_space<vmem>>, %arg7: memref<2x32xf32, #tpu.memory_space<vmem>>) attributes {dimension_semantics = [#tpu.dimension_semantics<parallel>, #tpu.dimension_semantics<arbitrary>], iteration_bounds = array<i64: 1, 1>, scalar_prefetch = 0 : i64, scratch_operands = 1 : i64, tpu.core_type = #tpu.core_type<tc>, window_params = [{transform_indices = @transform_0, window_bounds = array<i64: 2, 8, 32>}, {pipeline_mode = #tpu.pipeline_mode<synchronous>, transform_indices = @transform_1, window_bounds = array<i64: 32, 32>}, {pipeline_mode = #tpu.pipeline_mode<synchronous>, transform_indices = @transform_2, window_bounds = array<i64: 1, 32>}, {transform_indices = @transform_3, window_bounds = array<i64: 2, 32>}, {transform_indices = @transform_4, window_bounds = array<i64: 2, 32>}]} {
    %c0_i32 = arith.constant 0 : i32
    %0 = arith.cmpi eq, %arg1, %c0_i32 : i32
    %1 = arith.extui %0 : i1 to i32
    %c0_i32_0 = arith.constant 0 : i32
    %2 = arith.cmpi ne, %1, %c0_i32_0 : i32
    scf.if %2 {
      %cst_9 = arith.constant 0.000000e+00 : f32
      %11 = vector.broadcast %cst_9 : f32 to vector<2x32xf32>
      %c0_10 = arith.constant 0 : index
      %c0_11 = arith.constant 0 : index
      %12 = vector.load %arg7[%c0_10, %c0_11] : memref<2x32xf32, #tpu.memory_space<vmem>>, vector<2x32xf32>
      tpu.vector_store %arg7[%c0_10, %c0_11], %11 {strides = array<i32>} : memref<2x32xf32, #tpu.memory_space<vmem>>, vector<2x32xf32>,
    } else {
    }
    %c0 = arith.constant 0 : index
    %c0_1 = arith.constant 0 : index
    %c0_2 = arith.constant 0 : index
    %3 = vector.load %arg2[%c0, %c0_1, %c0_2] : memref<2x8x32xf32, #tpu.memory_space<vmem>>, vector<2x8x32xf32>
    %c0_3 = arith.constant 0 : index
    %c0_4 = arith.constant 0 : index
    %4 = vector.load %arg7[%c0_3, %c0_4] : memref<2x32xf32, #tpu.memory_space<vmem>>, vector<2x32xf32>
    %cst = arith.constant dense<0.000000e+00> : vector<2x32xf32>
    %5 = vector.multi_reduction <add>, %3, %cst [1] : vector<2x8x32xf32> to vector<2x32xf32>
    %6 = arith.addf %4, %5 : vector<2x32xf32>
    %c0_5 = arith.constant 0 : index
    %c0_6 = arith.constant 0 : index
    %7 = vector.load %arg7[%c0_5, %c0_6] : memref<2x32xf32, #tpu.memory_space<vmem>>, vector<2x32xf32>
    tpu.vector_store %arg7[%c0_5, %c0_6], %6 {strides = array<i32>} : memref<2x32xf32, #tpu.memory_space<vmem>>, vector<2x32xf32>,
    %c0_i32_7 = arith.constant 0 : i32
    %8 = arith.cmpi eq, %arg1, %c0_i32_7 : i32
    %9 = arith.extui %8 : i1 to i32
    %c0_i32_8 = arith.constant 0 : i32
    %10 = arith.cmpi ne, %9, %c0_i32_8 : i32
    scf.if %10 {
      %c0_9 = arith.constant 0 : index
      %c0_10 = arith.constant 0 : index
      %11 = vector.load %arg7[%c0_9, %c0_10] : memref<2x32xf32, #tpu.memory_space<vmem>>, vector<2x32xf32>
      %cst_11 = arith.constant 1.250000e-01 : f32
      %12 = vector.broadcast %cst_11 : f32 to vector<2x32xf32>
      %13 = arith.mulf %11, %12 : vector<2x32xf32>
      %c0_12 = arith.constant 0 : index
      %c0_13 = arith.constant 0 : index
      %14 = vector.load %arg3[%c0_12, %c0_13] : memref<32x32xf32, #tpu.memory_space<vmem>>, vector<32x32xf32>
      %cst_14 = arith.constant dense<0.000000e+00> : vector<2x32xf32>
      %15 = tpu.matmul %13, %14, %cst_14 {dimension_numbers = #tpu.dot_dimension_numbers<[1], [0], [0], [1], [0, 0, 1, 1], [], []>} : vector<2x32xf32>, vector<32x32xf32>, vector<2x32xf32> -> vector<2x32xf32>
      %c0_15 = arith.constant 0 : index
      %c0_16 = arith.constant 0 : index
      %16 = vector.load %arg4[%c0_15, %c0_16] : memref<1x32xf32, #tpu.memory_space<vmem>>, vector<1x32xf32>
      %17 = vector.broadcast %16 : vector<1x32xf32> to vector<2x32xf32>
      %18 = arith.addf %15, %17 : vector<2x32xf32>
      %c0_17 = arith.constant 0 : index
      %c0_18 = arith.constant 0 : index
      %19 = vector.load %arg5[%c0_17, %c0_18] : memref<2x32xf32, #tpu.memory_space<vmem>>, vector<2x32xf32>
      tpu.vector_store %arg5[%c0_17, %c0_18], %18 {strides = array<i32>} : memref<2x32xf32, #tpu.memory_space<vmem>>, vector<2x32xf32>,
      %20 = arith.mulf %18, %18 : vector<2x32xf32>
      %cst_19 = arith.constant dense<0.000000e+00> : vector<2xf32>
      %21 = vector.multi_reduction <add>, %20, %cst_19 [1] : vector<2x32xf32> to vector<2xf32>
      %22 = vector.shape_cast %21 : vector<2xf32> to vector<2x1xf32>
      %cst_20 = arith.constant 1.000000e-24 : f32
      %23 = vector.broadcast %cst_20 : f32 to vector<2x1xf32>
      %24 = arith.maximumf %22, %23 : vector<2x1xf32>
      %25 = math.rsqrt %24 : vector<2x1xf32>
      %26 = vector.broadcast %25 : vector<2x1xf32> to vector<2x32xf32>
      %27 = arith.mulf %18, %26 : vector<2x32xf32>
      %c0_21 = arith.constant 0 : index
      %c0_22 = arith.constant 0 : index
      %28 = vector.load %arg6[%c0_21, %c0_22] : memref<2x32xf32, #tpu.memory_space<vmem>>, vector<2x32xf32>
      tpu.vector_store %arg6[%c0_21, %c0_22], %27 {strides = array<i32>} : memref<2x32xf32, #tpu.memory_space<vmem>>, vector<2x32xf32>,
    } else {
    }
    return
  }
  func.func @transform_0(%arg0: i32, %arg1: i32) -> (i32, i32, i32) {
    %c0_i32 = arith.constant 0 : i32
    %c0_i32_0 = arith.constant 0 : i32
    return %arg0, %arg1, %c0_i32 : i32, i32, i32
  }
  func.func @transform_1(%arg0: i32, %arg1: i32) -> (i32, i32) {
    %c0_i32 = arith.constant 0 : i32
    %c0_i32_0 = arith.constant 0 : i32
    %c0_i32_1 = arith.constant 0 : i32
    return %c0_i32, %c0_i32_0 : i32, i32
  }
  func.func @transform_2(%arg0: i32, %arg1: i32) -> (i32, i32) {
    %c0_i32 = arith.constant 0 : i32
    %c0_i32_0 = arith.constant 0 : i32
    %c0_i32_1 = arith.constant 0 : i32
    return %c0_i32, %c0_i32_0 : i32, i32
  }
  func.func @transform_3(%arg0: i32, %arg1: i32) -> (i32, i32) {
    %c0_i32 = arith.constant 0 : i32
    %c0_i32_0 = arith.constant 0 : i32
    return %arg0, %c0_i32 : i32, i32
  }
  func.func @transform_4(%arg0: i32, %arg1: i32) -> (i32, i32) {
    %c0_i32 = arith.constant 0 : i32
    %c0_i32_0 = arith.constant 0 : i32
    return %arg0, %c0_i32 : i32, i32
  }
}

</mosaic_0001>

<llo_original>
// kernel: tpu_custom_call.1
$region0: #{tpu_custom_call.1}
  #allocation0 [shape = 'u32[]', space=smem, size = 0x4, offset = 0x4, fixed_abs, tag = 'smem constant byte address 0x4 - core index']
  #allocation1 [shape = 'u32[144,128]{1,0:T(1,128)}', space=vmem, size = 0x12000, scoped, tag = 'internal scratch']
  #allocation2 [shape = 'f32[2,32]{1,0:T(2,128)}', space=vmem, size = 0x400, scoped, tag = 'scratch operand']
  %s0 = inlined_call_operand.hbm [shape: f32[2,8,32], index: 0, kind: input, shape index: {}]
  %s1 = inlined_call_operand.hbm [shape: f32[32,32], index: 1, kind: input, shape index: {}]
  %s2 = inlined_call_operand.vmem [shape: f32[1,32], index: 2, kind: input, shape index: {}]
  %s3 = inlined_call_operand.hbm [shape: f32[2,32], index: 3, kind: output, shape index: {0}]
  %s4 = inlined_call_operand.hbm [shape: f32[2,32], index: 4, kind: output, shape index: {1}]
  %5 = xla_tuple %s3, %s4
  %s6 = sld [smem:[#allocation0]]
  $region46: #{tpu_custom_call.1} parent=0
    _
  %s8 = ssub.s32 1, %s6
  %s9 = scalar_select 0, %s8, %s6
  $region1: #{tpu_custom_call.1} parent=0
    #allocation3 [shape = 'u8[8192]{0}', space=vmem, size = 0x2000, scoped, tag = 'input window, operand 0, single buffered']
    #allocation4 [shape = 's32[1]{0}', space=sflag, size = 0x4, scoped, tag = 'scoped memory for tpu_custom_call.1']
    #allocation5 [shape = 's32[1]{0}', space=sflag, size = 0x4, scoped, tag = 'scoped memory for tpu_custom_call.1']
    #allocation6 [shape = 'u8[16384]{0}', space=vmem, size = 0x4000, scoped, tag = 'input window, operand 1, single buffered']
    #allocation7 [shape = 's32[1]{0}', space=sflag, size = 0x4, scoped, tag = 'scoped memory for tpu_custom_call.1']
    #allocation8 [shape = 'u8[1024]{0}', space=vmem, size = 0x400, scoped, tag = 'output window, operand 0, single buffered']
    #allocation9 [shape = 'u8[1024]{0}', space=vmem, size = 0x400, scoped, tag = 'output window, operand 1, single buffered']
    #allocation10 [shape = 's32[1]{0}', space=sflag, size = 0x4, scoped, tag = 'scoped memory for tpu_custom_call.1']
    %10 = vsyncpa [#allocation4], 0
    %11 = vsyncpa [#allocation7], 0
    %12 = vsyncpa [#allocation5], 0
    %13 = vsyncpa [#allocation10], 0
    // Predicated region
    $region2: #{tpu_custom_call.1} parent=1 // pred_check
      _
    $region3: #{tpu_custom_call.1} parent=1 // pred_check_branch
      %15 = sbr.rel (0) target = $region5
    $region4: #{tpu_custom_call.1} parent=1 // pred_region
      %s17 = ssub.s32 256, 256
      %18 = vsyncadd [#allocation4], %s17
      %s19 = sshll.u32 [#allocation3], 4
      %s20 = int_to_ptr.vmem [resolvable:$true] %s19
      %25 = dma.hbm_to_vmem [thread:$0]  %s0, 256, %s20, [#allocation4], 128, 128, 8
    $region5: #{tpu_custom_call.1} parent=1 // pred_fallthru
      _
    // Predicated region
    $region6: #{tpu_custom_call.1} parent=1 // pred_check
      _
    $region7: #{tpu_custom_call.1} parent=1 // pred_check_branch
      %27 = sbr.rel (0) target = $region9
    $region8: #{tpu_custom_call.1} parent=1 // pred_region
      %s29 = ssub.s32 512, 512
      %30 = vsyncadd [#allocation7], %s29
      %s31 = sshll.u32 [#allocation6], 4
      %s32 = int_to_ptr.vmem [resolvable:$true] %s31
      %37 = dma.hbm_to_vmem [thread:$0]  %s1, 512, %s32, [#allocation7], 128, 128, 8
    $region9: #{tpu_custom_call.1} parent=1 // pred_fallthru
      _
    // Predicated region
    $region10: #{tpu_custom_call.1} parent=1 // pred_check
      _
    $region11: #{tpu_custom_call.1} parent=1 // pred_check_branch
      %39 = sbr.rel (0) target = $region13
    $region12: #{tpu_custom_call.1} parent=1 // pred_region
      _
    $region13: #{tpu_custom_call.1} parent=1 // pred_fallthru
      _
    // Predicated region
    $region14: #{tpu_custom_call.1} parent=1 // pred_check
      _
    $region15: #{tpu_custom_call.1} parent=1 // pred_check_branch
      %41 = sbr.rel (0) target = $region17
    $region16: #{tpu_custom_call.1} parent=1 // pred_region
      %42 = dma.done [#allocation4], 256
    $region17: #{tpu_custom_call.1} parent=1 // pred_fallthru
      _
    // Predicated region
    $region18: #{tpu_custom_call.1} parent=1 // pred_check
      _
    $region19: #{tpu_custom_call.1} parent=1 // pred_check_branch
      %44 = sbr.rel (0) target = $region21
    $region20: #{tpu_custom_call.1} parent=1 // pred_region
      %45 = dma.done [#allocation7], 512
    $region21: #{tpu_custom_call.1} parent=1 // pred_fallthru
      _
    %p46 = scmp.eq.s32.totalorder 0, 0
    // Predicated region
    $region22: #{tpu_custom_call.1} parent=1 // pred_check
      %p47 = pneg %p46
    $region23: #{tpu_custom_call.1} parent=1 // pred_check_branch
      %49 = sbr.rel (%p47) target = $region25
    $region24: #{tpu_custom_call.1} parent=1 // pred_region
      %vm50 = vcmask 254976
      %51 = vst.msk [vmem:[#allocation2] sm:$0x3] %vm50, 0.0
    $region25: #{tpu_custom_call.1} parent=1 // pred_fallthru
      _
    %v52 = vld [vmem:[#allocation3] sm:$0xff]
    %v53 = vld [vmem:[#allocation3 + $0x8] sm:$0xff]
    %v54 = vld [vmem:[#allocation2] sm:$0x3]
    %vm55 = vcmask 261120
    %v56 = vsel %vm55, %v52, 0.0
    %v57 = vrot.slane %v56, 4
    %v58 = vadd.f32 %v56, %v57
    %v59 = vrot.slane %v58, 2
    %v60 = vadd.f32 %v58, %v59
    %v61 = vrot.slane %v60, 1
    %v62 = vadd.f32 %v60, %v61
    %v63 = vsel %vm55, %v53, 0.0
    %v64 = vrot.slane %v63, 4
    %v65 = vadd.f32 %v63, %v64
    %v66 = vrot.slane %v65, 2
    %v67 = vadd.f32 %v65, %v66
    %v68 = vrot.slane %v67, 1
    %v69 = vadd.f32 %v67, %v68
    %vm72 = vcmask 1041409
    %v73 = vsel %vm72, %v69, %v62
    %v75 = vadd.f32 %v54, %v73
    %vm76 = vcmask 254976
    %77 = vst.msk [vmem:[#allocation2] sm:$0x3] %vm76, %v75
    // Predicated region
    $region26: #{tpu_custom_call.1} parent=1 // pred_check
      %p78 = pneg %p46
    $region27: #{tpu_custom_call.1} parent=1 // pred_check_branch
      %80 = sbr.rel (%p78) target = $region29
    $region28: #{tpu_custom_call.1} parent=1 // pred_region
      %v81 = vld [vmem:[#allocation2] sm:$0x3]
      %v82 = vmul.f32 %v81, 0.125
      %v83 = vld [vmem:[#allocation6] sm:$0xff]
      %v84 = vld [vmem:[#allocation6 + $0x8] sm:$0xff]
      %v85 = vld [vmem:[#allocation6 + $0x10] sm:$0xff]
      %v86 = vld [vmem:[#allocation6 + $0x18] sm:$0xff]
      %v87 = vld [vmem:[%s2] sm:$0x1]
      %v89 = vlaneseq
      %v90 = vshrl.u32 %v89, 7
      %v91 = vsub.s32 0, %v90
      %v92 = vrot.slane %v87, %v91
      %v95 = vsel %vm55, %v82, 0
      %97 = vmatprep.subr.mxu0 0.0
      %98 = vmatpush1.msra.mxu0 %v83
      %99 = vmatprep.subr.mxu0 0.0
      %100 = vmatpush1.msra.mxu0 %v84
      %101 = vmatprep.subr.mxu0 0.0
      %102 = vmatpush1.msra.mxu0 %v85
      %103 = vmatprep.subr.mxu0 0.0
      %104 = vmatpush1.msra.mxu0 %v86
      %105 = vmatprep.subr.mxu0 0.0
      %106 = vmatpush1.msra.mxu0 0.0
      %107 = vmatprep.subr.mxu0 0.0
      %108 = vmatpush1.msra.mxu0 0.0
      %109 = vmatprep.subr.mxu0 0.0
      %110 = vmatpush1.msra.mxu0 0.0
      %111 = vmatprep.subr.mxu0 0.0
      %112 = vmatpush1.msra.mxu0 0.0
      %113 = vmatprep.subr.mxu0 0.0
      %114 = vmatpush1.msra.mxu0 0.0
      %115 = vmatprep.subr.mxu0 0.0
      %116 = vmatpush1.msra.mxu0 0.0
      %117 = vmatprep.subr.mxu0 0.0
      %118 = vmatpush1.msra.mxu0 0.0
      %119 = vmatprep.subr.mxu0 0.0
      %120 = vmatpush1.msra.mxu0 0.0
      %121 = vmatprep.subr.mxu0 0.0
      %122 = vmatpush1.msra.mxu0 0.0
      %123 = vmatprep.subr.mxu0 0.0
      %124 = vmatpush1.msra.mxu0 0.0
      %125 = vmatprep.subr.mxu0 0.0
      %126 = vmatpush1.msra.mxu0 0.0
      %127 = vmatprep.subr.mxu0 0.0
      %128 = vmatpush1.msra.mxu0 0.0
      %129 = vmatprep.subr.mxu0 0.0
      %130 = vmatpush1.msra.mxu0 0.0
      %131 = vmatprep.subr.mxu0 0.0
      %132 = vmatpush1.msra.mxu0 0.0
      %133 = vmatprep.subr.mxu0 0.0
      %134 = vmatpush1.msra.mxu0 0.0
      %135 = vmatprep.subr.mxu0 0.0
      %136 = vmatpush1.msra.mxu0 0.0
      %137 = vmatprep.subr.mxu0 0.0
      %138 = vmatpush1.msra.mxu0 0.0
      %139 = vmatprep.subr.mxu0 0.0
      %140 = vmatpush1.msra.mxu0 0.0
      %141 = vmatprep.subr.mxu0 0.0
      %142 = vmatpush1.msra.mxu0 0.0
      %143 = vmatprep.subr.mxu0 0.0
      %144 = vmatpush1.msra.mxu0 0.0
      %145 = vmatprep.subr.mxu0 0.0
      %146 = vmatpush1.msra.mxu0 0.0
      %147 = vmatprep.subr.mxu0 0.0
      %148 = vmatpush1.msra.mxu0 0.0
      %149 = vmatprep.subr.mxu0 0.0
      %150 = vmatpush1.msra.mxu0 0.0
      %151 = vmatprep.subr.mxu0 0.0
      %152 = vmatpush1.msra.mxu0 0.0
      %153 = vmatprep.subr.mxu0 0.0
      %154 = vmatpush1.msra.mxu0 0.0
      %155 = vmatprep.subr.mxu0 0.0
      %156 = vmatpush1.msra.mxu0 0.0
      %157 = vmatprep.subr.mxu0 0.0
      %158 = vmatpush1.msra.mxu0 0.0
      %159 = vmatprep.subr.mxu0 0.0
      %160 = vmatpush1.msra.mxu0 0.0
      %161 = vmatprep.mubr.f32.mxu0 0.0
      %162 = vmatmul.mubr.f32.gmra.mrb[0].mxu0 %v95
      %v163 = vpop.f32.mrb[0].mxu0
      %v164 = vadd.f32 %v92, %v163
      %v165 = vpop.f32.mrb[0].mxu0
      %166 = vdwg.mxu0
      %167 = vst.msk [vmem:[#allocation8] sm:$0x3] %vm76, %v164
      %v168 = vmul.f32 %v164, %v164
      %v169 = vsel %vm76, %v168, 0.0
      %170 = vadd.xlane.f32.xlu0 %v169
      %v171 = vpop.xlane.xlu0 %170
      %v172 = vmax.f32 %v171, 1e-24
      %v173 = vrsqrt.pop %v172
      %v174 = vmul.f32 %v164, %v173
      %175 = vst.msk [vmem:[#allocation9] sm:$0x3] %vm76, %v174
    $region29: #{tpu_custom_call.1} parent=1 // pred_fallthru
      _
    // Predicated region
    $region30: #{tpu_custom_call.1} parent=1 // pred_check
      _
    $region31: #{tpu_custom_call.1} parent=1 // pred_check_branch
      %177 = sbr.rel (0) target = $region33
    $region32: #{tpu_custom_call.1} parent=1 // pred_region
      %s179 = ssub.s32 32, 32
      %180 = vsyncadd [#allocation5], %s179
      %s182 = sshll.u32 [#allocation8], 4
      %s183 = int_to_ptr.vmem [resolvable:$true] %s182
      %185 = dma.vmem_to_hbm [thread:$0]  %s183, 32, %s3, [#allocation5]
    $region33: #{tpu_custom_call.1} parent=1 // pred_fallthru
      _
    // Predicated region
    $region34: #{tpu_custom_call.1} parent=1 // pred_check
      _
    $region35: #{tpu_custom_call.1} parent=1 // pred_check_branch
      %187 = sbr.rel (0) target = $region37
    $region36: #{tpu_custom_call.1} parent=1 // pred_region
      %s189 = ssub.s32 32, 32
      %190 = vsyncadd [#allocation10], %s189
      %s192 = sshll.u32 [#allocation9], 4
      %s193 = int_to_ptr.vmem [resolvable:$true] %s192
      %195 = dma.vmem_to_hbm [thread:$0]  %s193, 32, %s4, [#allocation10]
    $region37: #{tpu_custom_call.1} parent=1 // pred_fallthru
      _
    // Predicated region
    $region38: #{tpu_custom_call.1} parent=1 // pred_check
      _
    $region39: #{tpu_custom_call.1} parent=1 // pred_check_branch
      %197 = sbr.rel (0) target = $region41
    $region40: #{tpu_custom_call.1} parent=1 // pred_region
      %198 = dma.done [#allocation5], 32
    $region41: #{tpu_custom_call.1} parent=1 // pred_fallthru
      _
    // Predicated region
    $region42: #{tpu_custom_call.1} parent=1 // pred_check
      _
    $region43: #{tpu_custom_call.1} parent=1 // pred_check_branch
      %200 = sbr.rel (0) target = $region45
    $region44: #{tpu_custom_call.1} parent=1 // pred_region
      %201 = dma.done [#allocation10], 32
    $region45: #{tpu_custom_call.1} parent=1 // pred_fallthru
      _
    %202 = vsyncpa [#allocation4], 1
    %203 = vsyncpa [#allocation7], 1
    %204 = vsyncpa [#allocation5], 1
    %205 = vsyncpa [#allocation10], 1

</llo_original>
